<compile_context>
chip_gen: v7x
topology: tpu7x:2x2x1
jax: 0.10.0
libtpu: 0.0.40
codegen_flags: <defaults>
</compile_context>

<pallas_src>
import functools

import jax
import jax.numpy as jnp
from jax.experimental import pallas as pl
from jax.experimental.pallas import tpu as pltpu


def _round_up(v: int, m: int) -> int:
    return ((v + m - 1) // m) * m


def _vmem_budget_bytes() -> int:
    """~75% of physical VMEM; conservative fallback if the query is unavailable."""
    cap = 64 * 1024 * 1024
    try:
        info = pltpu.get_tpu_info()
        cap = int(getattr(info, "vmem_capacity_bytes", cap))
    except Exception:
        pass
    budget = (cap * 3) // 4
    return max(32 * 1024 * 1024, min(budget, 100 * 1024 * 1024))


def _resident_spec(block_shape):
    """VMEM-resident operand: same block every grid step, single-buffered."""
    imap = lambda i: (0,) * len(block_shape)
    try:
        return pl.BlockSpec(block_shape, imap, pipeline_mode=pl.Buffered(1))
    except Exception:
        # Older jax without pipeline_mode / Buffered(1): fall back to default buffering.
        return pl.BlockSpec(block_shape, imap)


def projection_layer_kernel(x_ref, w1_ref, w2_ref, params_ref, o_ref, *,
                            out_dim: int, n_pad: int):
    # MXU inputs in bf16, accumulation in f32.
    x = x_ref[...].astype(jnp.bfloat16)

    b1 = params_ref[0:1, :]      # (1, out_p) f32
    b2 = params_ref[1:2, :]
    gamma = params_ref[2:3, :]
    beta = params_ref[3:4, :]

    # projected = x @ W1 + b1   (W1 stored as (in, out) = PyTorch weight.T, bf16)
    projected = jnp.dot(x, w1_ref[...],
                        preferred_element_type=jnp.float32) + b1

    # Exact (erf-based) GELU in f32, matching nn.GELU() default.
    h = 0.5 * projected * (1.0 + jax.lax.erf(
        projected * jnp.float32(0.7071067811865476)))

    # fc: h @ W2 + b2   (h cast to bf16 for the MXU, accumulate f32)
    y = jnp.dot(h.astype(jnp.bfloat16), w2_ref[...],
                preferred_element_type=jnp.float32) + b2

    # Dropout: eval-mode identity.
    # TODO(synk): training-mode stochastic dropout (pltpu.prng_seed / prng_random_bits)
    # not implemented.

    # Residual with the pre-GELU projection (matches `x = x + projected`).
    y = y + projected

    # LayerNorm (eps=1e-5). Padded feature columns of y are exactly zero (weights/
    # biases were zero-padded), so the mean is exact with 1/out_dim; for the centered
    # sum-of-squares the padded columns each contribute mean^2, which we subtract.
    inv_d = jnp.float32(1.0 / out_dim)
    mean = jnp.sum(y, axis=-1, keepdims=True) * inv_d
    centered = y - mean
    var = (jnp.sum(centered * centered, axis=-1, keepdims=True)
           - jnp.float32(n_pad) * mean * mean) * inv_d
    var = jnp.maximum(var, 0.0)
    normed = centered * jax.lax.rsqrt(var + jnp.float32(1e-5))

    # Padded gamma/beta are zero -> padded output columns are zero (sliced off anyway).
    o_ref[...] = (normed * gamma + beta).astype(o_ref.dtype)


def prepare_projection_params(w1, b1, w2, b2, gamma, beta, *,
                              mxu_dtype=jnp.bfloat16):
    """One-time parameter prep: zero-pad the feature dim to a lane/MXU-friendly size
    and cast the matmul weights to the MXU dtype. Call once at setup, not per forward.

    w1: (input_dim, output_dim)   -- PyTorch projection.weight.T (pre-transposed!)
    w2: (output_dim, output_dim)  -- PyTorch fc.weight.T (pre-transposed!)
    b1, b2, gamma, beta: (output_dim,)
    """
    input_dim, output_dim = w1.shape
    assert w2.shape == (output_dim, output_dim), "w2 must be (output_dim, output_dim)"

    # Lane-dense padded feature dim; 256-aligned for larger dims (v6e/v7x 256x256 MXU).
    lane_align = 256 if output_dim > 128 else 128
    out_p = _round_up(output_dim, lane_align)
    pad_o = out_p - output_dim

    f32 = jnp.float32
    w1_p = jnp.pad(w1.astype(f32), ((0, 0), (0, pad_o))).astype(mxu_dtype)
    w2_p = jnp.pad(w2.astype(f32), ((0, pad_o), (0, pad_o))).astype(mxu_dtype)
    # b1 / b2 / gamma / beta packed into a single resident (4, out_p) f32 array.
    params = jnp.stack([
        jnp.pad(b1.astype(f32), (0, pad_o)),
        jnp.pad(b2.astype(f32), (0, pad_o)),
        jnp.pad(gamma.astype(f32), (0, pad_o)),
        jnp.pad(beta.astype(f32), (0, pad_o)),
    ], axis=0)

    return {
        "w1": w1_p, "w2": w2_p, "params": params,
        "input_dim": int(input_dim), "output_dim": int(output_dim), "out_p": int(out_p),
    }


def _choose_tile_m(M, input_dim, out_p, x_itemsize, out_itemsize, w_itemsize,
                   budget_bytes, tile_m):
    resident = (input_dim * out_p + out_p * out_p) * w_itemsize + 4 * out_p * 4
    tm = min(tile_m, _round_up(M, 8))
    if M >= 16:
        # Keep at least 2 grid steps so the "parallel" axis can shard across the two
        # v7x TensorCores (and the pipeline has something to overlap).
        tm = min(tm, _round_up(-(-M // 2), 8))
    tm = max(_round_up(tm, 8), 8)

    def estimate(t):
        tiles = 2 * t * (input_dim * x_itemsize + out_p * out_itemsize)  # dbl-buffered x/out
        live = t * out_p * (4 + 2 + 4) + t * input_dim * (4 + 2)         # projected/h/y + x casts
        return resident + tiles + live

    while tm > 8 and estimate(tm) > budget_bytes:
        tm = max(_round_up(tm // 2, 8), 8)
    return tm


def projection_layer_forward(x, prepared, *, tile_m: int = 512, interpret: bool = False):
    """Fused ProjectionLayer forward. x: (batch, seq, input_dim)."""
    input_dim = prepared["input_dim"]
    output_dim = prepared["output_dim"]
    out_p = prepared["out_p"]

    batch, seq, xd = x.shape
    assert xd == input_dim, f"expected last dim {input_dim}, got {xd}"

    M = batch * seq
    x2d = x.reshape(M, input_dim)          # metadata-only reshape; no HBM copy, no padding

    w_itemsize = prepared["w1"].dtype.itemsize
    budget = _vmem_budget_bytes()
    tm = _choose_tile_m(M, input_dim, out_p, x2d.dtype.itemsize, x.dtype.itemsize,
                        w_itemsize, budget, tile_m)
    grid = (pl.cdiv(M, tm),)               # boundary block handled by Pallas masking

    # TODO(synk): for very large output_dim where bf16 w1+w2 no longer fit VMEM-resident
    # (e.g. ~>3K on v7x), add an N-tiled grid axis streaming w2 column slabs with h kept
    # in scratch; current path assumes resident weights.

    flops = 2 * M * (input_dim * output_dim + output_dim * output_dim)
    bytes_accessed = (x2d.size * x2d.dtype.itemsize
                      + prepared["w1"].size * w_itemsize
                      + prepared["w2"].size * w_itemsize
                      + prepared["params"].size * 4
                      + M * out_p * x.dtype.itemsize)
    cost = pl.CostEstimate(flops=int(flops),
                           transcendentals=int(M * output_dim),
                           bytes_accessed=int(bytes_accessed))

    kernel = functools.partial(projection_layer_kernel,
                               out_dim=output_dim, n_pad=out_p - output_dim)

    out2d = pl.pallas_call(
        kernel,
        out_shape=jax.ShapeDtypeStruct((M, out_p), x.dtype),
        grid_spec=pltpu.PrefetchScalarGridSpec(
            num_scalar_prefetch=0,
            grid=grid,
            in_specs=[
                # x tile: pipelined / double-buffered; full-extent (unpadded) feature dim.
                pl.BlockSpec((tm, input_dim), lambda i: (i, 0)),
                # Resident, single-buffered operands (block index never changes).
                _resident_spec((input_dim, out_p)),   # w1 (bf16)
                _resident_spec((out_p, out_p)),       # w2 (bf16)
                _resident_spec((4, out_p)),           # packed b1/b2/gamma/beta (f32)
            ],
            out_specs=pl.BlockSpec((tm, out_p), lambda i: (i, 0)),
        ),
        compiler_params=pltpu.CompilerParams(
            dimension_semantics=("parallel",),
            vmem_limit_bytes=int(budget),
        ),
        cost_estimate=cost,
        interpret=interpret,
    )(x2d, prepared["w1"], prepared["w2"], prepared["params"])

    if out_p != output_dim:
        out2d = out2d[:, :output_dim]
    return out2d.reshape(batch, seq, output_dim)


def _reference(x, w1, b1, w2, b2, gamma, beta, *, mxu_dtype=jnp.float32):
    c = lambda a: a.astype(mxu_dtype)
    projected = jnp.dot(c(x), c(w1), preferred_element_type=jnp.float32) + b1
    h = 0.5 * projected * (1.0 + jax.lax.erf(projected * jnp.float32(0.7071067811865476)))
    y = jnp.dot(c(h), c(w2), preferred_element_type=jnp.float32) + b2
    y = y + projected
    mean = jnp.mean(y, axis=-1, keepdims=True)
    var = jnp.mean((y - mean) ** 2, axis=-1, keepdims=True)
    return (y - mean) * jax.lax.rsqrt(var + jnp.float32(1e-5)) * gamma + beta


if __name__ == "__main__":
    batch, seq = 2, 8
    input_dim, output_dim = 32, 32

    key = jax.random.PRNGKey(0)
    kx, kw1, kb1, kw2, kb2 = jax.random.split(key, 5)

    x = jax.random.normal(kx, (batch, seq, input_dim), dtype=jnp.float32)

    # Linear weights stored pre-transposed as (in, out) = PyTorch weight.T.
    w1 = jax.random.normal(kw1, (input_dim, output_dim), dtype=jnp.float32) * 0.05
    b1 = jax.random.normal(kb1, (output_dim,), dtype=jnp.float32) * 0.01
    w2 = jax.random.normal(kw2, (output_dim, output_dim), dtype=jnp.float32) * 0.05
    b2 = jax.random.normal(kb2, (output_dim,), dtype=jnp.float32) * 0.01
    gamma = jnp.ones((output_dim,), dtype=jnp.float32)   # LayerNorm weight
    beta = jnp.zeros((output_dim,), dtype=jnp.float32)   # LayerNorm bias

    # One-time parameter prep (padding + bf16 casts happen here, not per call).
    prepared = prepare_projection_params(w1, b1, w2, b2, gamma, beta)

    out = projection_layer_forward(x, prepared)
    jax.block_until_ready(out)

    assert out.shape == (batch, seq, output_dim)
    assert bool(jnp.all(jnp.isfinite(out)))

    # Tight check vs. a reference that uses the same bf16 MXU inputs (isolates fusion
    # correctness from bf16 quantization), plus a looser check vs. the pure-f32 module.
    ref_bf16 = _reference(x, w1, b1, w2, b2, gamma, beta, mxu_dtype=jnp.bfloat16)
    err_bf16 = float(jnp.max(jnp.abs(out - ref_bf16)))
    assert jnp.allclose(out, ref_bf16, atol=2e-3, rtol=2e-3), err_bf16

    ref_f32 = _reference(x, w1, b1, w2, b2, gamma, beta)
    err_f32 = float(jnp.max(jnp.abs(out - ref_f32)))
    assert jnp.allclose(out, ref_f32, atol=5e-2, rtol=5e-2), err_f32

    # Second shape: M = 15 exercises the partial final row-block (masked writeback)
    # with no HBM padding copy of x.
    x2 = jax.random.normal(jax.random.PRNGKey(1), (3, 5, input_dim), dtype=jnp.float32)
    out2 = projection_layer_forward(x2, prepared, tile_m=8)
    jax.block_until_ready(out2)
    assert out2.shape == (3, 5, output_dim)
    ref2 = _reference(x2, w1, b1, w2, b2, gamma, beta, mxu_dtype=jnp.bfloat16)
    assert jnp.allclose(out2, ref2, atol=2e-3, rtol=2e-3)

    print("KERNEL_OK")
</pallas_src>

<mosaic_0001>
module attributes {stable_mosaic.version = 11 : i64} {
  func.func @projection_layer_kernel(%arg0: i32, %arg1: memref<8x32xf32, #tpu.memory_space<vmem>>, %arg2: memref<32x128xbf16, #tpu.memory_space<vmem>>, %arg3: memref<128x128xbf16, #tpu.memory_space<vmem>>, %arg4: memref<4x128xf32, #tpu.memory_space<vmem>>, %arg5: memref<8x128xf32, #tpu.memory_space<vmem>>) attributes {dimension_semantics = [#tpu.dimension_semantics<parallel>], iteration_bounds = array<i64: 2>, scalar_prefetch = 0 : i64, scratch_operands = 0 : i64, tpu.core_type = #tpu.core_type<tc>, window_params = [{transform_indices = @transform_0, window_bounds = array<i64: 8, 32>}, {pipeline_mode = #tpu.pipeline_mode<synchronous>, transform_indices = @transform_1, window_bounds = array<i64: 32, 128>}, {pipeline_mode = #tpu.pipeline_mode<synchronous>, transform_indices = @transform_2, window_bounds = array<i64: 128, 128>}, {pipeline_mode = #tpu.pipeline_mode<synchronous>, transform_indices = @transform_3, window_bounds = array<i64: 4, 128>}, {transform_indices = @transform_4, window_bounds = array<i64: 8, 128>}]} {
    %c0 = arith.constant 0 : index
    %c0_0 = arith.constant 0 : index
    %0 = vector.load %arg1[%c0, %c0_0] : memref<8x32xf32, #tpu.memory_space<vmem>>, vector<8x32xf32>
    %1 = arith.truncf %0 : vector<8x32xf32> to vector<8x32xbf16>
    %c0_1 = arith.constant 0 : index
    %c0_2 = arith.constant 0 : index
    %2 = vector.load %arg4[%c0_1, %c0_2] : memref<4x128xf32, #tpu.memory_space<vmem>>, vector<1x128xf32>
    %c1 = arith.constant 1 : index
    %c0_3 = arith.constant 0 : index
    %3 = vector.load %arg4[%c1, %c0_3] : memref<4x128xf32, #tpu.memory_space<vmem>>, vector<1x128xf32>
    %c2 = arith.constant 2 : index
    %c0_4 = arith.constant 0 : index
    %4 = vector.load %arg4[%c2, %c0_4] : memref<4x128xf32, #tpu.memory_space<vmem>>, vector<1x128xf32>
    %c3 = arith.constant 3 : index
    %c0_5 = arith.constant 0 : index
    %5 = vector.load %arg4[%c3, %c0_5] : memref<4x128xf32, #tpu.memory_space<vmem>>, vector<1x128xf32>
    %c0_6 = arith.constant 0 : index
    %c0_7 = arith.constant 0 : index
    %6 = vector.load %arg2[%c0_6, %c0_7] : memref<32x128xbf16, #tpu.memory_space<vmem>>, vector<32x128xbf16>
    %cst = arith.constant dense<0.000000e+00> : vector<8x128xf32>
    %7 = tpu.matmul %1, %6, %cst {dimension_numbers = #tpu.dot_dimension_numbers<[1], [0], [0], [1], [0, 0, 1, 1], [], []>} : vector<8x32xbf16>, vector<32x128xbf16>, vector<8x128xf32> -> vector<8x128xf32>
    %8 = vector.broadcast %2 : vector<1x128xf32> to vector<8x128xf32>
    %9 = arith.addf %7, %8 : vector<8x128xf32>
    %cst_8 = arith.constant 5.000000e-01 : f32
    %10 = vector.broadcast %cst_8 : f32 to vector<8x128xf32>
    %11 = arith.mulf %10, %9 : vector<8x128xf32>
    %cst_9 = arith.constant 0.707106769 : f32
    %12 = vector.broadcast %cst_9 : f32 to vector<8x128xf32>
    %13 = arith.mulf %9, %12 : vector<8x128xf32>
    %14 = math.erf %13 : vector<8x128xf32>
    %cst_10 = arith.constant 1.000000e+00 : f32
    %15 = vector.broadcast %cst_10 : f32 to vector<8x128xf32>
    %16 = arith.addf %15, %14 : vector<8x128xf32>
    %17 = arith.mulf %11, %16 : vector<8x128xf32>
    %18 = arith.truncf %17 : vector<8x128xf32> to vector<8x128xbf16>
    %c0_11 = arith.constant 0 : index
    %c0_12 = arith.constant 0 : index
    %19 = vector.load %arg3[%c0_11, %c0_12] : memref<128x128xbf16, #tpu.memory_space<vmem>>, vector<128x128xbf16>
    %cst_13 = arith.constant dense<0.000000e+00> : vector<8x128xf32>
    %20 = tpu.matmul %18, %19, %cst_13 {dimension_numbers = #tpu.dot_dimension_numbers<[1], [0], [0], [1], [0, 0, 1, 1], [], []>} : vector<8x128xbf16>, vector<128x128xbf16>, vector<8x128xf32> -> vector<8x128xf32>
    %21 = vector.broadcast %3 : vector<1x128xf32> to vector<8x128xf32>
    %22 = arith.addf %20, %21 : vector<8x128xf32>
    %23 = arith.addf %22, %9 : vector<8x128xf32>
    %cst_14 = arith.constant dense<0.000000e+00> : vector<8xf32>
    %24 = vector.multi_reduction <add>, %23, %cst_14 [1] : vector<8x128xf32> to vector<8xf32>
    %25 = vector.shape_cast %24 : vector<8xf32> to vector<8x1xf32>
    %cst_15 = arith.constant 3.125000e-02 : f32
    %26 = vector.broadcast %cst_15 : f32 to vector<8x1xf32>
    %27 = arith.mulf %25, %26 : vector<8x1xf32>
    %28 = vector.broadcast %27 : vector<8x1xf32> to vector<8x128xf32>
    %29 = arith.subf %23, %28 : vector<8x128xf32>
    %30 = arith.mulf %29, %29 : vector<8x128xf32>
    %cst_16 = arith.constant dense<0.000000e+00> : vector<8xf32>
    %31 = vector.multi_reduction <add>, %30, %cst_16 [1] : vector<8x128xf32> to vector<8xf32>
    %32 = vector.shape_cast %31 : vector<8xf32> to vector<8x1xf32>
    %cst_17 = arith.constant 9.600000e+01 : f32
    %33 = vector.broadcast %cst_17 : f32 to vector<8x1xf32>
    %34 = arith.mulf %33, %27 : vector<8x1xf32>
    %35 = arith.mulf %34, %27 : vector<8x1xf32>
    %36 = arith.subf %32, %35 : vector<8x1xf32>
    %cst_18 = arith.constant 3.125000e-02 : f32
    %37 = vector.broadcast %cst_18 : f32 to vector<8x1xf32>
    %38 = arith.mulf %36, %37 : vector<8x1xf32>
    %cst_19 = arith.constant 0.000000e+00 : f32
    %39 = vector.broadcast %cst_19 : f32 to vector<8x1xf32>
    %40 = arith.maximumf %38, %39 : vector<8x1xf32>
    %cst_20 = arith.constant 9.99999974E-6 : f32
    %41 = vector.broadcast %cst_20 : f32 to vector<8x1xf32>
    %42 = arith.addf %40, %41 : vector<8x1xf32>
    %43 = math.rsqrt %42 : vector<8x1xf32>
    %44 = vector.broadcast %43 : vector<8x1xf32> to vector<8x128xf32>
    %45 = arith.mulf %29, %44 : vector<8x128xf32>
    %46 = vector.broadcast %4 : vector<1x128xf32> to vector<8x128xf32>
    %47 = arith.mulf %45, %46 : vector<8x128xf32>
    %48 = vector.broadcast %5 : vector<1x128xf32> to vector<8x128xf32>
    %49 = arith.addf %47, %48 : vector<8x128xf32>
    %c0_21 = arith.constant 0 : index
    %c0_22 = arith.constant 0 : index
    %50 = vector.load %arg5[%c0_21, %c0_22] : memref<8x128xf32, #tpu.memory_space<vmem>>, vector<8x128xf32>
    tpu.vector_store %arg5[%c0_21, %c0_22], %49 {strides = array<i32>} : memref<8x128xf32, #tpu.memory_space<vmem>>, vector<8x128xf32>,
    return
  }
  func.func @transform_0(%arg0: i32) -> (i32, i32) {
    %c0_i32 = arith.constant 0 : i32
    %c0_i32_0 = arith.constant 0 : i32
    return %arg0, %c0_i32 : i32, i32
  }
  func.func @transform_1(%arg0: i32) -> (i32, i32) {
    %c0_i32 = arith.constant 0 : i32
    %c0_i32_0 = arith.constant 0 : i32
    %c0_i32_1 = arith.constant 0 : i32
    return %c0_i32, %c0_i32_0 : i32, i32
  }
  func.func @transform_2(%arg0: i32) -> (i32, i32) {
    %c0_i32 = arith.constant 0 : i32
    %c0_i32_0 = arith.constant 0 : i32
    %c0_i32_1 = arith.constant 0 : i32
    return %c0_i32, %c0_i32_0 : i32, i32
  }
  func.func @transform_3(%arg0: i32) -> (i32, i32) {
    %c0_i32 = arith.constant 0 : i32
    %c0_i32_0 = arith.constant 0 : i32
    %c0_i32_1 = arith.constant 0 : i32
    return %c0_i32, %c0_i32_0 : i32, i32
  }
  func.func @transform_4(%arg0: i32) -> (i32, i32) {
    %c0_i32 = arith.constant 0 : i32
    %c0_i32_0 = arith.constant 0 : i32
    return %arg0, %c0_i32 : i32, i32
  }
}

</mosaic_0001>

<llo_original>
// kernel: tpu_custom_call.1
$region0: #{tpu_custom_call.1}
  #allocation0 [shape = 'u32[]', space=smem, size = 0x4, offset = 0x4, fixed_abs, tag = 'smem constant byte address 0x4 - core index']
  #allocation1 [shape = 'u32[144,128]{1,0:T(1,128)}', space=vmem, size = 0x12000, scoped, tag = 'internal scratch']
  %s0 = inlined_call_operand.hbm [shape: f32[16,32], index: 0, kind: input, shape index: {}]
  %s1 = inlined_call_operand.hbm [shape: bf16[32,128], index: 1, kind: input, shape index: {}]
  %s2 = inlined_call_operand.hbm [shape: bf16[128,128], index: 2, kind: input, shape index: {}]
  %s3 = inlined_call_operand.vmem [shape: f32[4,128], index: 3, kind: input, shape index: {}]
  %s4 = inlined_call_operand.hbm [shape: f32[16,128], index: 4, kind: output, shape index: {}]
  %s5 = sld [smem:[#allocation0]]
  $region61: #{tpu_custom_call.1} parent=0
    _
  %s7 = ssub.s32 1, %s5
  %s8 = scalar_select 0, %s7, %s5
  $region1: #{tpu_custom_call.1} parent=0
    #allocation2 [shape = 'u8[8192]{0}', space=vmem, size = 0x2000, scoped, tag = 'input window, operand 0']
    #allocation3 [shape = 's32[2]{0}', space=sflag, size = 0x8, scoped, tag = 'scoped memory for tpu_custom_call.1']
    #allocation4 [shape = 's32[2]{0}', space=sflag, size = 0x8, scoped, tag = 'scoped memory for tpu_custom_call.1']
    #allocation5 [shape = 'u8[8192]{0}', space=vmem, size = 0x2000, scoped, tag = 'input window, operand 1, single buffered']
    #allocation6 [shape = 's32[1]{0}', space=sflag, size = 0x4, scoped, tag = 'scoped memory for tpu_custom_call.1']
    #allocation7 [shape = 'u8[32768]{0}', space=vmem, size = 0x8000, scoped, tag = 'input window, operand 2, single buffered']
    #allocation8 [shape = 'u8[8192]{0}', space=vmem, size = 0x2000, scoped, tag = 'output window, operand 0']
    %9 = vsyncpa [#allocation3], 0
    %s10 = scalar_lea.sflag [#allocation3], 1
    %11 = vsyncpa %s10, 0
    %12 = vsyncpa [#allocation6], 0
    %13 = vsyncpa [#allocation4], 0
    %s14 = scalar_lea.sflag [#allocation4], 1
    %15 = vsyncpa %s14, 0
    loop: start=0, step=1, limit=4
    $region2: #{tpu_custom_call.1} parent=1 // loop_pre_header
      _
    $region3: #{tpu_custom_call.1} parent=1 // loop_header
      %s17 = sphi 0, %s21
      %p18 = scmp.ge.s32.totalorder %s17, 4
      %s27 = sphi 0, %s29
      %s30 = sphi 0, %s27
      %s31 = sphi 0, %s30
      %s47 = sphi 0, %s31
      %s51 = sphi 0, %s51
      %s53 = sphi 0, %s51
      %s54 = sphi 0, %s53
      %s68 = sphi 0, %s54
      %s72 = sphi 0, %s72
      %s74 = sphi 0, %s72
      %s75 = sphi 0, %s74
      %s89 = sphi 0, %s75
      %s93 = sphi 0, %s93
      %s95 = sphi 0, %s93
      %s96 = sphi 0, %s95
      %s110 = sphi 0, %s96
      %s116 = sphi 0, %s118
      %s119 = sphi 0, %s116
      %s120 = sphi 0, %s119
      %s136 = sphi 0, %s120
    $region4: #{tpu_custom_call.1} parent=1 // loop_header_branch
      %20 = sbr.rel (%p18) target = $region8
    $region5: #{tpu_custom_call.1} parent=1 // loop_body
      %s22 = ssub.s32 %s17, 1
      %s23 = ssub.s32 %s17, 2
      %s24 = sadd.s32 %s17, 1
      %s25 = ssub.s32 %s17, %s24
      %p26 = scmp.eq.s32.totalorder %s25, 0
      %s28 = sadd.s32 %s27, 1
      %s29 = scalar_select %p26, %s27, %s28
      %p32 = pneg %p26
      %p33 = scmp.eq.s32.totalorder %s17, 1
      %p34 = por %p32, %p33
      %p35 = scmp.ne.s32.totalorder %s27, %s30
      %p36 = scmp.eq.s32.totalorder %s17, 0
      %p37 = por %p35, %p36
      %p38 = scmp.ne.s32.totalorder %s27, %s30
      %p39 = scmp.eq.s32.totalorder %s22, 1
      %p40 = por %p38, %p39
      %p41 = scmp.ne.s32.totalorder %s30, %s31
      %p42 = scmp.eq.s32.totalorder %s22, 0
      %p43 = por %p41, %p42
      %p44 = scmp.ne.s32.totalorder %s30, %s31
      %p45 = scmp.eq.s32.totalorder %s23, 1
      %p46 = por %p44, %p45
      %p48 = scmp.ne.s32.totalorder %s31, %s47
      %p49 = scmp.eq.s32.totalorder %s23, 0
      %p50 = por %p48, %p49
      %s52 = sadd.s32 %s51, 1
      %p55 = scmp.eq.s32.totalorder %s17, 1
      %p56 = scmp.ne.s32.totalorder %s51, %s53
      %p57 = scmp.eq.s32.totalorder %s17, 0
      %p58 = por %p56, %p57
      %p59 = scmp.ne.s32.totalorder %s51, %s53
      %p60 = scmp.eq.s32.totalorder %s22, 1
      %p61 = por %p59, %p60
      %p62 = scmp.ne.s32.totalorder %s53, %s54
      %p63 = scmp.eq.s32.totalorder %s22, 0
      %p64 = por %p62, %p63
      %p65 = scmp.ne.s32.totalorder %s53, %s54
      %p66 = scmp.eq.s32.totalorder %s23, 1
      %p67 = por %p65, %p66
      %p69 = scmp.ne.s32.totalorder %s54, %s68
      %p70 = scmp.eq.s32.totalorder %s23, 0
      %p71 = por %p69, %p70
      %s73 = sadd.s32 %s72, 1
      %p76 = scmp.eq.s32.totalorder %s17, 1
      %p77 = scmp.ne.s32.totalorder %s72, %s74
      %p78 = scmp.eq.s32.totalorder %s17, 0
      %p79 = por %p77, %p78
      %p80 = scmp.ne.s32.totalorder %s72, %s74
      %p81 = scmp.eq.s32.totalorder %s22, 1
      %p82 = por %p80, %p81
      %p83 = scmp.ne.s32.totalorder %s74, %s75
      %p84 = scmp.eq.s32.totalorder %s22, 0
      %p85 = por %p83, %p84
      %p86 = scmp.ne.s32.totalorder %s74, %s75
      %p87 = scmp.eq.s32.totalorder %s23, 1
      %p88 = por %p86, %p87
      %p90 = scmp.ne.s32.totalorder %s75, %s89
      %p91 = scmp.eq.s32.totalorder %s23, 0
      %p92 = por %p90, %p91
      %s94 = sadd.s32 %s93, 1
      %p97 = scmp.eq.s32.totalorder %s17, 1
      %p98 = scmp.ne.s32.totalorder %s93, %s95
      %p99 = scmp.eq.s32.totalorder %s17, 0
      %p100 = por %p98, %p99
      %p101 = scmp.ne.s32.totalorder %s93, %s95
      %p102 = scmp.eq.s32.totalorder %s22, 1
      %p103 = por %p101, %p102
      %p104 = scmp.ne.s32.totalorder %s95, %s96
      %p105 = scmp.eq.s32.totalorder %s22, 0
      %p106 = por %p104, %p105
      %p107 = scmp.ne.s32.totalorder %s95, %s96
      %p108 = scmp.eq.s32.totalorder %s23, 1
      %p109 = por %p107, %p108
      %p111 = scmp.ne.s32.totalorder %s96, %s110
      %p112 = scmp.eq.s32.totalorder %s23, 0
      %p113 = por %p111, %p112
      %s114 = ssub.s32 %s17, %s24
      %p115 = scmp.eq.s32.totalorder %s114, 0
      %s117 = sadd.s32 %s116, 1
      %s118 = scalar_select %p115, %s116, %s117
      %p121 = pneg %p115
      %p122 = scmp.eq.s32.totalorder %s17, 1
      %p123 = por %p121, %p122
      %p124 = scmp.ne.s32.totalorder %s116, %s119
      %p125 = scmp.eq.s32.totalorder %s17, 0
      %p126 = por %p124, %p125
      %p127 = scmp.ne.s32.totalorder %s116, %s119
      %p128 = scmp.eq.s32.totalorder %s22, 1
      %p129 = por %p127, %p128
      %p130 = scmp.ne.s32.totalorder %s119, %s120
      %p131 = scmp.eq.s32.totalorder %s22, 0
      %p132 = por %p130, %p131
      %p133 = scmp.ne.s32.totalorder %s119, %s120
      %p134 = scmp.eq.s32.totalorder %s23, 1
      %p135 = por %p133, %p134
      %p137 = scmp.ne.s32.totalorder %s120, %s136
      %p138 = scmp.eq.s32.totalorder %s23, 0
      %p139 = por %p137, %p138
      %p140 = scmp.le.s32.totalorder 1, %s17
      %p141 = scmp.lt.s32.totalorder %s17, 3
      %p142 = pnand %p140, %p141
      %p143 = pneg %p142
      // Predicated region
      $region9: #{tpu_custom_call.1} parent=5 // pred_check
        _
      $region10: #{tpu_custom_call.1} parent=5 // pred_check_branch
        %145 = sbr.rel (%p142) target = $region12
      $region11: #{tpu_custom_call.1} parent=5 // pred_region
        %s146 = ssub.s32 %s17, 1
        // Predicated region
        $region13: #{tpu_custom_call.1} parent=11 // pred_check
          %p147 = pneg %p64
        $region14: #{tpu_custom_call.1} parent=11 // pred_check_branch
          %149 = sbr.rel (%p147) target = $region16
        $region15: #{tpu_custom_call.1} parent=11 // pred_region
          %s151 = ssub.s32 256, 256
          %152 = vsyncadd [#allocation6], %s151
          %s153 = sshll.u32 [#allocation5], 4
          %s154 = int_to_ptr.vmem [resolvable:$true] %s153
          %159 = dma.hbm_to_vmem [thread:$0]  %s1, 256, %s154, [#allocation6], 64, 64, 4
        $region16: #{tpu_custom_call.1} parent=11 // pred_fallthru
          _
        // Predicated region
        $region17: #{tpu_custom_call.1} parent=11 // pred_check
          %p160 = pneg %p85
        $region18: #{tpu_custom_call.1} parent=11 // pred_check_branch
          %162 = sbr.rel (%p160) target = $region20
        $region19: #{tpu_custom_call.1} parent=11 // pred_region
          %s164 = ssub.s32 1024, 1024
          %165 = vsyncadd [#allocation6], %s164
          %s166 = sshll.u32 [#allocation7], 4
          %s167 = int_to_ptr.vmem [resolvable:$true] %s166
          %172 = dma.hbm_to_vmem [thread:$0]  %s2, 1024, %s167, [#allocation6], 64, 64, 4
        $region20: #{tpu_custom_call.1} parent=11 // pred_fallthru
          _
        // Predicated region
        $region21: #{tpu_custom_call.1} parent=11 // pred_check
          %p173 = pneg %p106
        $region22: #{tpu_custom_call.1} parent=11 // pred_check_branch
          %175 = sbr.rel (%p173) target = $region24
        $region23: #{tpu_custom_call.1} parent=11 // pred_region
          _
        $region24: #{tpu_custom_call.1} parent=11 // pred_fallthru
          _
      $region12: #{tpu_custom_call.1} parent=5 // pred_fallthru
        _
      %p176 = scmp.lt.s32.totalorder %s17, 2
      // Predicated region
      $region25: #{tpu_custom_call.1} parent=5 // pred_check
        %p177 = pneg %p176
      $region26: #{tpu_custom_call.1} parent=5 // pred_check_branch
        %179 = sbr.rel (%p177) target = $region28
      $region27: #{tpu_custom_call.1} parent=5 // pred_region
        // Predicated region
        $region29: #{tpu_custom_call.1} parent=27 // pred_check
          %p180 = pneg %p37
        $region30: #{tpu_custom_call.1} parent=27 // pred_check_branch
          %182 = sbr.rel (%p180) target = $region32
        $region31: #{tpu_custom_call.1} parent=27 // pred_region
          %s183 = sand.u32 %s27, 1
          %s184 = scalar_lea.sflag [#allocation3], %s183
          %s185 = sand.u32 %s27, 1
          %s186 = smul.addr %s185, 8
          %s187 = scalar_lea.vmem [#allocation2], %s186
          %s189 = ssub.s32 128, 128
          %190 = vsyncadd %s184, %s189
          %s191 = smul.addr %s17, 128
          %s192 = scalar_lea.hbm %s0, %s191
          %s194 = sshll.u32 %s187, 4
          %s195 = int_to_ptr.vmem [resolvable:$true] %s194
          %197 = dma.hbm_to_vmem [thread:$0]  %s192, 128, %s195, %s184
        $region32: #{tpu_custom_call.1} parent=27 // pred_fallthru
          _
      $region28: #{tpu_custom_call.1} parent=5 // pred_fallthru
        _
      %p198 = scmp.le.s32.totalorder 1, %s17
      %p199 = scmp.lt.s32.totalorder %s17, 3
      %p200 = pnand %p198, %p199
      %p201 = pneg %p200
      // Predicated region
      $region33: #{tpu_custom_call.1} parent=5 // pred_check
        _
      $region34: #{tpu_custom_call.1} parent=5 // pred_check_branch
        %203 = sbr.rel (%p200) target = $region36
      $region35: #{tpu_custom_call.1} parent=5 // pred_region
        %s204 = ssub.s32 %s17, 1
        %s205 = sand.u32 %s30, 1
        %s206 = scalar_lea.sflag [#allocation3], %s205
        %s207 = sand.u32 %s30, 1
        %s208 = smul.addr %s207, 8
        %s209 = scalar_lea.vmem [#allocation2], %s208
        // Predicated region
        $region37: #{tpu_custom_call.1} parent=35 // pred_check
          %p210 = pneg %p43
        $region38: #{tpu_custom_call.1} parent=35 // pred_check_branch
          %212 = sbr.rel (%p210) target = $region40
        $region39: #{tpu_custom_call.1} parent=35 // pred_region
          %213 = dma.done %s206, 128
        $region40: #{tpu_custom_call.1} parent=35 // pred_fallthru
          _
        // Predicated region
        $region41: #{tpu_custom_call.1} parent=35 // pred_check
          %p214 = pneg %p64
        $region42: #{tpu_custom_call.1} parent=35 // pred_check_branch
          %216 = sbr.rel (%p214) target = $region44
        $region43: #{tpu_custom_call.1} parent=35 // pred_region
          %217 = dma.done [#allocation6], 256
        $region44: #{tpu_custom_call.1} parent=35 // pred_fallthru
          _
        // Predicated region
        $region45: #{tpu_custom_call.1} parent=35 // pred_check
          %p218 = pneg %p85
        $region46: #{tpu_custom_call.1} parent=35 // pred_check_branch
          %220 = sbr.rel (%p218) target = $region48
        $region47: #{tpu_custom_call.1} parent=35 // pred_region
          %221 = dma.done [#allocation6], 1024
        $region48: #{tpu_custom_call.1} parent=35 // pred_fallthru
          _
        %s222 = sand.u32 %s30, 1
        %s223 = scalar_lea.sflag [#allocation3], %s222
        %s224 = sand.u32 %s30, 1
        %s225 = smul.addr %s224, 8
        %s226 = scalar_lea.vmem [#allocation2], %s225
        %p227 = pneg %p43
        %p228 = pneg %p40
        %p229 = pneg %p64
        %p230 = pneg %p61
        %p231 = pneg %p85
        %p232 = pneg %p82
        %p233 = pneg %p106
        %p234 = pneg %p103
        %p235 = pneg %p132
        %p236 = pneg %p129
        %s237 = sand.u32 %s119, 1
        %s238 = scalar_lea.sflag [#allocation4], %s237
        %s239 = sand.u32 %s119, 1
        %s240 = smul.addr %s239, 8
        %s241 = scalar_lea.vmem [#allocation8], %s240
        %v243 = vld [vmem:[%s209] sm:$0xff]
        %v244 = vpack.c.bf16 %v243, %v243
        %v245 = vld [vmem:[%s3] sm:$0x1]
        %v246 = vld [vmem:[%s3 + $0x1] sm:$0x1]
        %v247 = vld [vmem:[%s3 + $0x2] sm:$0x1]
        %v248 = vld [vmem:[%s3 + $0x3] sm:$0x1]
        %v249 = vld [vmem:[#allocation5] sm:$0xf]
        %v250 = vld [vmem:[#allocation5 + $0x4] sm:$0xf]
        %v251 = vld [vmem:[#allocation5 + $0x8] sm:$0xf]
        %v252 = vld [vmem:[#allocation5 + $0xc] sm:$0xf]
        %v253 = vlaneseq
        %v254 = vshrl.u32 %v253, 7
        %v255 = vsub.s32 0, %v254
        %v256 = vrot.slane %v245, %v255
        %v261 = vunpack.c.l.b16 %v249
        %v262 = vunpack.c.l.b16 %v250
        %v263 = vunpack.c.l.b16 %v251
        %v264 = vunpack.c.l.b16 %v252
        %v265 = vpack.c.b16 %v262, %v261
        %v266 = vpack.c.b16 %v264, %v263
        %vm269 = vcmask 261120
        %v271 = vsel %vm269, %v244, 0
        %273 = vmatprep.subr.bf16.mxu0 0
        %274 = vmatpush1.bf16.msra.mxu0 %v265
        %275 = vmatprep.subr.bf16.mxu0 0
        %276 = vmatpush1.bf16.msra.mxu0 %v266
        %277 = vmatprep.subr.bf16.mxu0 0
        %278 = vmatpush1.bf16.msra.mxu0 0
        %279 = vmatprep.subr.bf16.mxu0 0
        %280 = vmatpush1.bf16.msra.mxu0 0
        %281 = vmatprep.subr.bf16.mxu0 0
        %282 = vmatpush1.bf16.msra.mxu0 0
        %283 = vmatprep.subr.bf16.mxu0 0
        %284 = vmatpush1.bf16.msra.mxu0 0
        %285 = vmatprep.subr.bf16.mxu0 0
        %286 = vmatpush1.bf16.msra.mxu0 0
        %287 = vmatprep.subr.bf16.mxu0 0
        %288 = vmatpush1.bf16.msra.mxu0 0
        %289 = vmatprep.subr.bf16.mxu0 0
        %290 = vmatpush1.bf16.msra.mxu0 0
        %291 = vmatprep.subr.bf16.mxu0 0
        %292 = vmatpush1.bf16.msra.mxu0 0
        %293 = vmatprep.subr.bf16.mxu0 0
        %294 = vmatpush1.bf16.msra.mxu0 0
        %295 = vmatprep.subr.bf16.mxu0 0
        %296 = vmatpush1.bf16.msra.mxu0 0
        %297 = vmatprep.subr.bf16.mxu0 0
        %298 = vmatpush1.bf16.msra.mxu0 0
        %299 = vmatprep.subr.bf16.mxu0 0
        %300 = vmatpush1.bf16.msra.mxu0 0
        %301 = vmatprep.subr.bf16.mxu0 0
        %302 = vmatpush1.bf16.msra.mxu0 0
        %303 = vmatprep.subr.bf16.mxu0 0
        %304 = vmatpush1.bf16.msra.mxu0 0
        %305 = vmatprep.mubr.bf16.mxu0 0
        %306 = vmatmul.mubr.bf16.gmra.mrb[0].mxu0 %v271
        %v307 = vpop.f32.mrb[0].mxu0
        %v308 = vadd.f32 %v256, %v307
        %v309 = vpop.f32.mrb[0].mxu0
        %v310 = vpop.f32.mrb[0].mxu0
        %v311 = vpop.f32.mrb[0].mxu0
        %312 = vdwg.mxu0
        %v313 = vmul.f32 %v308, 0.5
        %v314 = vmul.f32 %v308, 0.70710677
        %v315 = verf.f32.pop %v314
        %v316 = vadd.f32 %v315, 1.0
        %v317 = vmul.f32 %v313, %v316
        %v318 = vpack.c.bf16 %v317, %v317
        %v319 = vld [vmem:[#allocation7] sm:$0xf]
        %v320 = vld [vmem:[#allocation7 + $0x4] sm:$0xf]
        %v321 = vld [vmem:[#allocation7 + $0x8] sm:$0xf]
        %v322 = vld [vmem:[#allocation7 + $0xc] sm:$0xf]
        %v323 = vld [vmem:[#allocation7 + $0x10] sm:$0xf]
        %v324 = vld [vmem:[#allocation7 + $0x14] sm:$0xf]
        %v325 = vld [vmem:[#allocation7 + $0x18] sm:$0xf]
        %v326 = vld [vmem:[#allocation7 + $0x1c] sm:$0xf]
        %v327 = vld [vmem:[#allocation7 + $0x20] sm:$0xf]
        %v328 = vld [vmem:[#allocation7 + $0x24] sm:$0xf]
        %v329 = vld [vmem:[#allocation7 + $0x28] sm:$0xf]
        %v330 = vld [vmem:[#allocation7 + $0x2c] sm:$0xf]
        %v331 = vld [vmem:[#allocation7 + $0x30] sm:$0xf]
        %v332 = vld [vmem:[#allocation7 + $0x34] sm:$0xf]
        %v333 = vld [vmem:[#allocation7 + $0x38] sm:$0xf]
        %v334 = vld [vmem:[#allocation7 + $0x3c] sm:$0xf]
        %v335 = vlaneseq
        %v336 = vshrl.u32 %v335, 7
        %v337 = vsub.s32 0, %v336
        %v338 = vrot.slane %v246, %v337
        %v355 = vunpack.c.l.b16 %v319
        %v356 = vunpack.c.l.b16 %v320
        %v357 = vunpack.c.l.b16 %v321
        %v358 = vunpack.c.l.b16 %v322
        %v359 = vunpack.c.l.b16 %v323
        %v360 = vunpack.c.l.b16 %v324
        %v361 = vunpack.c.l.b16 %v325
        %v362 = vunpack.c.l.b16 %v326
        %v363 = vunpack.c.l.b16 %v327
        %v364 = vunpack.c.l.b16 %v328
        %v365 = vunpack.c.l.b16 %v329
        %v366 = vunpack.c.l.b16 %v330
        %v367 = vunpack.c.l.b16 %v331
        %v368 = vunpack.c.l.b16 %v332
        %v369 = vunpack.c.l.b16 %v333
        %v370 = vunpack.c.l.b16 %v334
        %v371 = vpack.c.b16 %v356, %v355
        %v372 = vpack.c.b16 %v358, %v357
        %v373 = vpack.c.b16 %v360, %v359
        %v374 = vpack.c.b16 %v362, %v361
        %v375 = vpack.c.b16 %v364, %v363
        %v376 = vpack.c.b16 %v366, %v365
        %v377 = vpack.c.b16 %v368, %v367
        %v378 = vpack.c.b16 %v370, %v369
        %387 = vmatprep.subr.bf16.mxu0 0
        %388 = vmatpush1.bf16.msra.mxu0 %v371
        %389 = vmatprep.subr.bf16.mxu0 0
        %390 = vmatpush1.bf16.msra.mxu0 %v372
        %391 = vmatprep.subr.bf16.mxu0 0
        %392 = vmatpush1.bf16.msra.mxu0 %v373
        %393 = vmatprep.subr.bf16.mxu0 0
        %394 = vmatpush1.bf16.msra.mxu0 %v374
        %395 = vmatprep.subr.bf16.mxu0 0
        %396 = vmatpush1.bf16.msra.mxu0 %v375
        %397 = vmatprep.subr.bf16.mxu0 0
        %398 = vmatpush1.bf16.msra.mxu0 %v376
        %399 = vmatprep.subr.bf16.mxu0 0
        %400 = vmatpush1.bf16.msra.mxu0 %v377
        %401 = vmatprep.subr.bf16.mxu0 0
        %402 = vmatpush1.bf16.msra.mxu0 %v378
        %403 = vmatprep.subr.bf16.mxu0 0
        %404 = vmatpush1.bf16.msra.mxu0 0
        %405 = vmatprep.subr.bf16.mxu0 0
        %406 = vmatpush1.bf16.msra.mxu0 0
        %407 = vmatprep.subr.bf16.mxu0 0
        %408 = vmatpush1.bf16.msra.mxu0 0
        %409 = vmatprep.subr.bf16.mxu0 0
        %410 = vmatpush1.bf16.msra.mxu0 0
        %411 = vmatprep.subr.bf16.mxu0 0
        %412 = vmatpush1.bf16.msra.mxu0 0
        %413 = vmatprep.subr.bf16.mxu0 0
        %414 = vmatpush1.bf16.msra.mxu0 0
        %415 = vmatprep.subr.bf16.mxu0 0
        %416 = vmatpush1.bf16.msra.mxu0 0
        %417 = vmatprep.subr.bf16.mxu0 0
        %418 = vmatpush1.bf16.msra.mxu0 0
        %419 = vmatprep.mubr.bf16.mxu0 0
        %420 = vmatmul.mubr.bf16.gmra.mrb[0].mxu0 %v318
        %v421 = vpop.f32.mrb[0].mxu0
        %v422 = vadd.f32 %v338, %v421
        %v423 = vpop.f32.mrb[0].mxu0
        %v424 = vpop.f32.mrb[0].mxu0
        %v425 = vpop.f32.mrb[0].mxu0
        %426 = vdwg.mxu0
        %v427 = vadd.f32 %v422, %v308
        %428 = vadd.xlane.f32.xlu0 %v427
        %v429 = vpop.xlane.xlu0 %428
        %v430 = vmul.f32 %v429, 0.03125
        %v431 = vsub.f32 %v427, %v430
        %v432 = vmul.f32 %v431, %v431
        %433 = vadd.xlane.f32.xlu0 %v432
        %v434 = vpop.xlane.xlu0 %433
        %v435 = vmul.f32 %v430, 96.0
        %v436 = vmul.f32 %v435, %v430
        %v437 = vsub.f32 %v434, %v436
        %v438 = vmul.f32 %v437, 0.03125
        %v439 = vmax.f32 %v438, 0.0
        %v440 = vadd.f32 %v439, 1e-05
        %v441 = vrsqrt.pop %v440
        %v442 = vmul.f32 %v431, %v441
        %v443 = vlaneseq
        %v444 = vshrl.u32 %v443, 7
        %v445 = vsub.s32 0, %v444
        %v446 = vrot.slane %v247, %v445
        %v447 = vmul.f32 %v442, %v446
        %v448 = vlaneseq
        %v449 = vshrl.u32 %v448, 7
        %v450 = vsub.s32 0, %v449
        %v451 = vrot.slane %v248, %v450
        %v452 = vadd.f32 %v447, %v451
        %453 = vst [vmem:[%s241] sm:$0xff] %v452
        %s454 = sand.u32 %s119, 1
        %s455 = scalar_lea.sflag [#allocation4], %s454
        %s456 = sand.u32 %s119, 1
        %s457 = smul.addr %s456, 8
        %s458 = scalar_lea.vmem [#allocation8], %s457
        // Predicated region
        $region49: #{tpu_custom_call.1} parent=35 // pred_check
          %p459 = pneg %p129
        $region50: #{tpu_custom_call.1} parent=35 // pred_check_branch
          %461 = sbr.rel (%p459) target = $region52
        $region51: #{tpu_custom_call.1} parent=35 // pred_region
          %s463 = ssub.s32 128, 128
          %464 = vsyncadd %s455, %s463
          %s465 = smul.addr %s22, 128
          %s466 = scalar_lea.hbm %s4, %s465
          %s468 = sshll.u32 %s458, 4
          %s469 = int_to_ptr.vmem [resolvable:$true] %s468
          %471 = dma.vmem_to_hbm [thread:$0]  %s469, 128, %s466, %s455
        $region52: #{tpu_custom_call.1} parent=35 // pred_fallthru
          _
      $region36: #{tpu_custom_call.1} parent=5 // pred_fallthru
        _
      %p472 = scmp.le.s32.totalorder 2, %s17
      // Predicated region
      $region53: #{tpu_custom_call.1} parent=5 // pred_check
        %p473 = pneg %p472
      $region54: #{tpu_custom_call.1} parent=5 // pred_check_branch
        %475 = sbr.rel (%p473) target = $region56
      $region55: #{tpu_custom_call.1} parent=5 // pred_region
        %s476 = ssub.s32 %s17, 2
        // Predicated region
        $region57: #{tpu_custom_call.1} parent=55 // pred_check
          %p477 = pneg %p135
        $region58: #{tpu_custom_call.1} parent=55 // pred_check_branch
          %479 = sbr.rel (%p477) target = $region60
        $region59: #{tpu_custom_call.1} parent=55 // pred_region
          %s480 = sand.u32 %s120, 1
          %s481 = scalar_lea.sflag [#allocation4], %s480
          %s482 = sand.u32 %s120, 1
          %s483 = smul.addr %s482, 8
          %s484 = scalar_lea.vmem [#allocation8], %s483
          %485 = dma.done %s481, 128
        $region60: #{tpu_custom_call.1} parent=55 // pred_fallthru
          _
      $region56: #{tpu_custom_call.1} parent=5 // pred_fallthru
        _
    $region6: #{tpu_custom_call.1} parent=1 // loop_footer
      %s21 = sadd.s32 1, %s17
    $region7: #{tpu_custom_call.1} parent=1 // loop_footer_branch
      %16 = sbr.rel target = $region3
    $region8: #{tpu_custom_call.1} parent=1 // loop_exit
      _
    %486 = vsyncpa [#allocation3], 1
    %s487 = scalar_lea.sflag [#allocation3], 1
    %488 = vsyncpa %s487, 1
    %489 = vsyncpa [#allocation6], 1
    %490 = vsyncpa [#allocation4], 1
    %s491 = scalar_lea.sflag [#allocation4], 1
    %492 = vsyncpa %s491, 1

</llo_original>
